<compile_context>
chip_gen: v7x
topology: tpu7x:2x2x1
jax: 0.10.0
libtpu: 0.0.40
codegen_flags: <defaults>
</compile_context>

<pallas_src>
import math

import jax
import jax.numpy as jnp
from jax.experimental import pallas as pl
from jax.experimental.pallas import tpu as pltpu

ALPHA = 0.2  # LeakyReLU negative slope (torch `alpha` arg)


def _round_up(x, m):
    return ((x + m - 1) // m) * m


# --------------------------------------------------------------------------
# Kernel 1: projection  h = x @ W ,  f12 = h @ [a1 | a2]
# --------------------------------------------------------------------------
def _proj_kernel(x_ref, w_ref, a12_ref, h_ref, f12_ref):
    h = jnp.dot(x_ref[...], w_ref[...], preferred_element_type=jnp.float32)
    h_ref[...] = h
    # a · cat(h_i, h_j) == h_i @ a1 + h_j @ a2 ; compute both halves in one dot.
    f12_ref[...] = jnp.dot(h, a12_ref[...], preferred_element_type=jnp.float32)


def _project(x_p, w_p, a12, tm):
    np_, f_in = x_p.shape
    fp = w_p.shape[1]
    return pl.pallas_call(
        _proj_kernel,
        out_shape=(
            jax.ShapeDtypeStruct((np_, fp), jnp.float32),
            jax.ShapeDtypeStruct((np_, 2), jnp.float32),
        ),
        grid_spec=pltpu.PrefetchScalarGridSpec(
            num_scalar_prefetch=0,
            grid=(np_ // tm,),
            in_specs=[
                pl.BlockSpec((tm, f_in), lambda i: (i, 0)),
                pl.BlockSpec((f_in, fp), lambda i: (0, 0)),
                pl.BlockSpec((fp, 2), lambda i: (0, 0)),
            ],
            out_specs=[
                pl.BlockSpec((tm, fp), lambda i: (i, 0)),
                pl.BlockSpec((tm, 2), lambda i: (i, 0)),
            ],
        ),
        compiler_params=pltpu.CompilerParams(
            dimension_semantics=("parallel",),
            vmem_limit_bytes=32 * 1024 * 1024,
        ),
    )(x_p, w_p, a12)


# --------------------------------------------------------------------------
# Kernel 2: masked attention aggregation (flash-style accumulation over j)
# --------------------------------------------------------------------------
def _attn_kernel(flags_ref, adj_ref, f1_ref, f2t_ref, h_ref, out_ref,
                 acc_ref, rs_ref):
    i = pl.program_id(0)
    j = pl.program_id(1)

    @pl.when(j == 0)
    def _init():
        acc_ref[...] = jnp.zeros_like(acc_ref)
        rs_ref[...] = jnp.zeros_like(rs_ref)

    # Skip all-zero adjacency blocks: their contribution is exactly zero.
    @pl.when(flags_ref[i, j] != 0)
    def _compute():
        s = f1_ref[...] + f2t_ref[...]                     # [tm, tn]
        s = jnp.where(s > 0, s, ALPHA * s)                 # LeakyReLU
        e = jnp.exp(-s)
        # keep the select form (not e * mask) so any overflow on masked entries
        # is discarded rather than propagated
        e = jnp.where(adj_ref[...] != 0, e, 0.0)           # [tm, tn]
        rs_ref[...] += jnp.sum(e, axis=-1, keepdims=True)
        acc_ref[...] += jnp.dot(e, h_ref[...],
                                preferred_element_type=jnp.float32)

    @pl.when(j == pl.num_programs(1) - 1)
    def _finalize():
        rs = rs_ref[...]
        # Guard padded / isolated rows (no edges) so 0-rowsum never makes NaN;
        # their accumulator is exactly 0 so the output row is 0 either way.
        rs_safe = jnp.where(rs > 0.0, rs, 1.0)
        inv = pl.reciprocal(rs_safe, approx=True)          # EUP, ~free vs divide
        inv = inv * (2.0 - rs_safe * inv)                  # 1 Newton step -> ~f32 exact
        hp = acc_ref[...] * inv
        out_ref[...] = jnp.where(hp > 0, hp, jnp.exp(hp) - 1.0).astype(out_ref.dtype)


# --------------------------------------------------------------------------
# Wrapper
# --------------------------------------------------------------------------
def sp_graph_attention_layer(x, adj, W, a, *, tm=128, tn=128):
    """x: [N, F_in], adj: [N, N] (nonzero = edge), W: [F_in, F_out], a: [1, 2*F_out].

    tm/tn are the row/neighbor tile sizes.  Defaults are small for the demo;
    for large graphs use larger tn (512-2048 on v6e, 256-1024 on v7x).
    """
    N, f_in = x.shape
    f_out = W.shape[1]

    fp = _round_up(f_out, 128)            # lane-dense output feature dim
    blk = math.lcm(tm, tn)
    np_ = _round_up(N, blk)               # pad node dim to tile multiple

    x_p = jnp.zeros((np_, f_in), jnp.float32).at[:N, :].set(x.astype(jnp.float32))
    w_p = jnp.zeros((f_in, fp), jnp.float32).at[:, :f_out].set(W.astype(jnp.float32))
    a12 = jnp.zeros((fp, 2), jnp.float32)
    a12 = a12.at[:f_out, 0].set(a[0, :f_out].astype(jnp.float32))
    a12 = a12.at[:f_out, 1].set(a[0, f_out:].astype(jnp.float32))

    # adj is only ever a nonzero test -> int8 mask (4x less HBM/VMEM traffic).
    adj_i8 = jnp.zeros((np_, np_), jnp.int8).at[:N, :N].set(
        (adj != 0).astype(jnp.int8))

    # --- kernel 1: h, packed attention logits
    h_p, f12 = _project(x_p, w_p, a12, tm)
    f1 = f12[:, 0:1]        # [np_, 1]  row-node term (sublane-oriented)
    f2t = f12[:, 1:2].T     # [1, np_]  col-node term, made lane-dense ONCE here

    num_i = np_ // tm
    num_j = np_ // tn

    # per-block "has any edge" flags for the block-sparsity skip
    flags = (adj_i8.reshape(num_i, tm, num_j, tn) != 0).any(axis=(1, 3))
    flags = flags.astype(jnp.int32)

    out_p = pl.pallas_call(
        _attn_kernel,
        out_shape=jax.ShapeDtypeStruct((np_, fp), jnp.float32),
        grid_spec=pltpu.PrefetchScalarGridSpec(
            num_scalar_prefetch=1,
            grid=(num_i, num_j),
            in_specs=[
                pl.BlockSpec((tm, tn), lambda i, j, fl: (i, j)),   # adj mask tile
                pl.BlockSpec((tm, 1), lambda i, j, fl: (i, 0)),    # f1 (rows)
                pl.BlockSpec((1, tn), lambda i, j, fl: (0, j)),    # f2t (cols)
                pl.BlockSpec((tn, fp), lambda i, j, fl: (j, 0)),   # h (col nodes)
            ],
            out_specs=pl.BlockSpec((tm, fp), lambda i, j, fl: (i, 0)),
            scratch_shapes=[
                pltpu.VMEM((tm, fp), jnp.float32),   # e @ h accumulator
                pltpu.VMEM((tm, 1), jnp.float32),    # rowsum accumulator
            ],
        ),
        compiler_params=pltpu.CompilerParams(
            dimension_semantics=("parallel", "arbitrary"),
            vmem_limit_bytes=32 * 1024 * 1024,
        ),
    )(flags, adj_i8, f1, f2t, h_p)

    return out_p[:N, :f_out]


# --------------------------------------------------------------------------
# Pure-JAX reference of the same math
# --------------------------------------------------------------------------
def _reference(x, adj, W, a):
    f_out = W.shape[1]
    h = x @ W
    f1 = h @ a[:, :f_out].T
    f2 = h @ a[:, f_out:].T
    s = f1 + f2.T
    s = jnp.where(s > 0, s, ALPHA * s)
    e = jnp.where(adj != 0, jnp.exp(-s), 0.0)
    rowsum = e.sum(-1, keepdims=True)
    hp = (e @ h) / rowsum
    return jnp.where(hp > 0, hp, jnp.exp(hp) - 1.0)


if __name__ == "__main__":
    key = jax.random.PRNGKey(0)
    N, F_IN, F_OUT = 200, 64, 32   # small, non-tile-aligned (exercises padding)

    k_x, k_adj, k_w, k_a = jax.random.split(key, 4)

    x = jax.random.normal(k_x, (N, F_IN), dtype=jnp.float32)

    # Sparse-ish adjacency with self-loops (every row has >= 1 edge).
    adj = (jax.random.uniform(k_adj, (N, N)) < 0.15)
    adj = adj.at[:128, 128:].set(False)   # force one all-zero block (skip path)
    adj = jnp.maximum(adj.astype(jnp.float32), jnp.eye(N, dtype=jnp.float32))

    # Parameters: xavier_normal_ with gain=1.414 (deterministic synthetic init)
    gain = 1.414
    std_w = gain * math.sqrt(2.0 / (F_IN + F_OUT))
    std_a = gain * math.sqrt(2.0 / (1 + 2 * F_OUT))
    W = std_w * jax.random.normal(k_w, (F_IN, F_OUT), dtype=jnp.float32)
    a = std_a * jax.random.normal(k_a, (1, 2 * F_OUT), dtype=jnp.float32)

    out = sp_graph_attention_layer(x, adj, W, a)
    out = jax.block_until_ready(out)

    ref = _reference(x, adj, W, a)
    assert out.shape == (N, F_OUT)
    assert bool(jnp.all(jnp.isfinite(out)))
    # approx reciprocal + Newton step -> near-f32 exact; modest tolerance for
    # block-order accumulation differences
    assert bool(jnp.allclose(out, ref, atol=1e-2, rtol=1e-2)), float(
        jnp.max(jnp.abs(out - ref)))

    print("KERNEL_OK")
</pallas_src>

<mosaic_0001>
module attributes {stable_mosaic.version = 11 : i64} {
  func.func @_proj_kernel(%arg0: i32, %arg1: memref<128x64xf32, #tpu.memory_space<vmem>>, %arg2: memref<64x128xf32, #tpu.memory_space<vmem>>, %arg3: memref<128x2xf32, #tpu.memory_space<vmem>>, %arg4: memref<128x128xf32, #tpu.memory_space<vmem>>, %arg5: memref<128x2xf32, #tpu.memory_space<vmem>>) attributes {dimension_semantics = [#tpu.dimension_semantics<parallel>], iteration_bounds = array<i64: 2>, scalar_prefetch = 0 : i64, scratch_operands = 0 : i64, tpu.core_type = #tpu.core_type<tc>, window_params = [{transform_indices = @transform_0, window_bounds = array<i64: 128, 64>}, {pipeline_mode = #tpu.pipeline_mode<synchronous>, transform_indices = @transform_1, window_bounds = array<i64: 64, 128>}, {pipeline_mode = #tpu.pipeline_mode<synchronous>, transform_indices = @transform_2, window_bounds = array<i64: 128, 2>}, {transform_indices = @transform_3, window_bounds = array<i64: 128, 128>}, {transform_indices = @transform_4, window_bounds = array<i64: 128, 2>}]} {
    %c0 = arith.constant 0 : index
    %c0_0 = arith.constant 0 : index
    %0 = vector.load %arg1[%c0, %c0_0] : memref<128x64xf32, #tpu.memory_space<vmem>>, vector<128x64xf32>
    %c0_1 = arith.constant 0 : index
    %c0_2 = arith.constant 0 : index
    %1 = vector.load %arg2[%c0_1, %c0_2] : memref<64x128xf32, #tpu.memory_space<vmem>>, vector<64x128xf32>
    %cst = arith.constant dense<0.000000e+00> : vector<128x128xf32>
    %2 = tpu.matmul %0, %1, %cst {dimension_numbers = #tpu.dot_dimension_numbers<[1], [0], [0], [1], [0, 0, 1, 1], [], []>} : vector<128x64xf32>, vector<64x128xf32>, vector<128x128xf32> -> vector<128x128xf32>
    %c0_3 = arith.constant 0 : index
    %c0_4 = arith.constant 0 : index
    %3 = vector.load %arg4[%c0_3, %c0_4] : memref<128x128xf32, #tpu.memory_space<vmem>>, vector<128x128xf32>
    tpu.vector_store %arg4[%c0_3, %c0_4], %2 {strides = array<i32>} : memref<128x128xf32, #tpu.memory_space<vmem>>, vector<128x128xf32>,
    %c0_5 = arith.constant 0 : index
    %c0_6 = arith.constant 0 : index
    %4 = vector.load %arg3[%c0_5, %c0_6] : memref<128x2xf32, #tpu.memory_space<vmem>>, vector<128x2xf32>
    %cst_7 = arith.constant dense<0.000000e+00> : vector<128x2xf32>
    %5 = tpu.matmul %2, %4, %cst_7 {dimension_numbers = #tpu.dot_dimension_numbers<[1], [0], [0], [1], [0, 0, 1, 1], [], []>} : vector<128x128xf32>, vector<128x2xf32>, vector<128x2xf32> -> vector<128x2xf32>
    %c0_8 = arith.constant 0 : index
    %c0_9 = arith.constant 0 : index
    %6 = vector.load %arg5[%c0_8, %c0_9] : memref<128x2xf32, #tpu.memory_space<vmem>>, vector<128x2xf32>
    tpu.vector_store %arg5[%c0_8, %c0_9], %5 {strides = array<i32>} : memref<128x2xf32, #tpu.memory_space<vmem>>, vector<128x2xf32>,
    return
  }
  func.func @transform_0(%arg0: i32) -> (i32, i32) {
    %c0_i32 = arith.constant 0 : i32
    %c0_i32_0 = arith.constant 0 : i32
    return %arg0, %c0_i32 : i32, i32
  }
  func.func @transform_1(%arg0: i32) -> (i32, i32) {
    %c0_i32 = arith.constant 0 : i32
    %c0_i32_0 = arith.constant 0 : i32
    %c0_i32_1 = arith.constant 0 : i32
    return %c0_i32, %c0_i32_0 : i32, i32
  }
  func.func @transform_2(%arg0: i32) -> (i32, i32) {
    %c0_i32 = arith.constant 0 : i32
    %c0_i32_0 = arith.constant 0 : i32
    %c0_i32_1 = arith.constant 0 : i32
    return %c0_i32, %c0_i32_0 : i32, i32
  }
  func.func @transform_3(%arg0: i32) -> (i32, i32) {
    %c0_i32 = arith.constant 0 : i32
    %c0_i32_0 = arith.constant 0 : i32
    return %arg0, %c0_i32 : i32, i32
  }
  func.func @transform_4(%arg0: i32) -> (i32, i32) {
    %c0_i32 = arith.constant 0 : i32
    %c0_i32_0 = arith.constant 0 : i32
    return %arg0, %c0_i32 : i32, i32
  }
}

</mosaic_0001>

<llo_original>
// kernel: tpu_custom_call.1
$region0: #{tpu_custom_call.1}
  #allocation0 [shape = 'u32[]', space=smem, size = 0x4, offset = 0x4, fixed_abs, tag = 'smem constant byte address 0x4 - core index']
  #allocation1 [shape = 'u32[144,128]{1,0:T(1,128)}', space=vmem, size = 0x12000, scoped, tag = 'internal scratch']
  %s0 = inlined_call_operand.vmem [shape: f32[256,64], index: 0, kind: input, shape index: {}]
  %s1 = inlined_call_operand.vmem [shape: f32[64,128], index: 1, kind: input, shape index: {}]
  %s2 = inlined_call_operand.vmem [shape: f32[128,2], index: 2, kind: input, shape index: {}]
  %s3 = inlined_call_operand.hbm [shape: f32[256,128], index: 3, kind: output, shape index: {0}]
  %s4 = inlined_call_operand.vmem [shape: f32[256,2], index: 4, kind: output, shape index: {1}]
  %5 = xla_tuple %s3, %s4
  %s6 = sld [smem:[#allocation0]]
  $region53: #{tpu_custom_call.1} parent=0
    _
  %s8 = ssub.s32 1, %s6
  %s9 = scalar_select 0, %s8, %s6
  $region1: #{tpu_custom_call.1} parent=0
    #allocation2 [shape = 'u8[131072]{0}', space=vmem, size = 0x20000, scoped, tag = 'output window, operand 0']
    #allocation3 [shape = 's32[2]{0}', space=sflag, size = 0x8, scoped, tag = 'scoped memory for tpu_custom_call.1']
    %10 = vsyncpa [#allocation3], 0
    %s11 = scalar_lea.sflag [#allocation3], 1
    %12 = vsyncpa %s11, 0
    loop: start=0, step=1, limit=4
    $region2: #{tpu_custom_call.1} parent=1 // loop_pre_header
      _
    $region3: #{tpu_custom_call.1} parent=1 // loop_header
      %s14 = sphi 0, %s18
      %p15 = scmp.ge.s32.totalorder %s14, 4
      %s24 = sphi 0, %s26
      %s27 = sphi 0, %s24
      %s28 = sphi 0, %s27
      %s44 = sphi 0, %s28
      %s48 = sphi 0, %s48
      %s50 = sphi 0, %s48
      %s51 = sphi 0, %s50
      %s65 = sphi 0, %s51
      %s69 = sphi 0, %s69
      %s71 = sphi 0, %s69
      %s72 = sphi 0, %s71
      %s86 = sphi 0, %s72
      %s92 = sphi 0, %s94
      %s95 = sphi 0, %s92
      %s96 = sphi 0, %s95
      %s112 = sphi 0, %s96
      %s118 = sphi 0, %s120
      %s121 = sphi 0, %s118
      %s122 = sphi 0, %s121
      %s138 = sphi 0, %s122
    $region4: #{tpu_custom_call.1} parent=1 // loop_header_branch
      %17 = sbr.rel (%p15) target = $region8
    $region5: #{tpu_custom_call.1} parent=1 // loop_body
      %s19 = ssub.s32 %s14, 1
      %s20 = ssub.s32 %s14, 2
      %s21 = sadd.s32 %s14, 1
      %s22 = ssub.s32 %s14, %s21
      %p23 = scmp.eq.s32.totalorder %s22, 0
      %s25 = sadd.s32 %s24, 1
      %s26 = scalar_select %p23, %s24, %s25
      %p29 = pneg %p23
      %p30 = scmp.eq.s32.totalorder %s14, 1
      %p31 = por %p29, %p30
      %p32 = scmp.ne.s32.totalorder %s24, %s27
      %p33 = scmp.eq.s32.totalorder %s14, 0
      %p34 = por %p32, %p33
      %p35 = scmp.ne.s32.totalorder %s24, %s27
      %p36 = scmp.eq.s32.totalorder %s19, 1
      %p37 = por %p35, %p36
      %p38 = scmp.ne.s32.totalorder %s27, %s28
      %p39 = scmp.eq.s32.totalorder %s19, 0
      %p40 = por %p38, %p39
      %p41 = scmp.ne.s32.totalorder %s27, %s28
      %p42 = scmp.eq.s32.totalorder %s20, 1
      %p43 = por %p41, %p42
      %p45 = scmp.ne.s32.totalorder %s28, %s44
      %p46 = scmp.eq.s32.totalorder %s20, 0
      %p47 = por %p45, %p46
      %s49 = sadd.s32 %s48, 1
      %p52 = scmp.eq.s32.totalorder %s14, 1
      %p53 = scmp.ne.s32.totalorder %s48, %s50
      %p54 = scmp.eq.s32.totalorder %s14, 0
      %p55 = por %p53, %p54
      %p56 = scmp.ne.s32.totalorder %s48, %s50
      %p57 = scmp.eq.s32.totalorder %s19, 1
      %p58 = por %p56, %p57
      %p59 = scmp.ne.s32.totalorder %s50, %s51
      %p60 = scmp.eq.s32.totalorder %s19, 0
      %p61 = por %p59, %p60
      %p62 = scmp.ne.s32.totalorder %s50, %s51
      %p63 = scmp.eq.s32.totalorder %s20, 1
      %p64 = por %p62, %p63
      %p66 = scmp.ne.s32.totalorder %s51, %s65
      %p67 = scmp.eq.s32.totalorder %s20, 0
      %p68 = por %p66, %p67
      %s70 = sadd.s32 %s69, 1
      %p73 = scmp.eq.s32.totalorder %s14, 1
      %p74 = scmp.ne.s32.totalorder %s69, %s71
      %p75 = scmp.eq.s32.totalorder %s14, 0
      %p76 = por %p74, %p75
      %p77 = scmp.ne.s32.totalorder %s69, %s71
      %p78 = scmp.eq.s32.totalorder %s19, 1
      %p79 = por %p77, %p78
      %p80 = scmp.ne.s32.totalorder %s71, %s72
      %p81 = scmp.eq.s32.totalorder %s19, 0
      %p82 = por %p80, %p81
      %p83 = scmp.ne.s32.totalorder %s71, %s72
      %p84 = scmp.eq.s32.totalorder %s20, 1
      %p85 = por %p83, %p84
      %p87 = scmp.ne.s32.totalorder %s72, %s86
      %p88 = scmp.eq.s32.totalorder %s20, 0
      %p89 = por %p87, %p88
      %s90 = ssub.s32 %s14, %s21
      %p91 = scmp.eq.s32.totalorder %s90, 0
      %s93 = sadd.s32 %s92, 1
      %s94 = scalar_select %p91, %s92, %s93
      %p97 = pneg %p91
      %p98 = scmp.eq.s32.totalorder %s14, 1
      %p99 = por %p97, %p98
      %p100 = scmp.ne.s32.totalorder %s92, %s95
      %p101 = scmp.eq.s32.totalorder %s14, 0
      %p102 = por %p100, %p101
      %p103 = scmp.ne.s32.totalorder %s92, %s95
      %p104 = scmp.eq.s32.totalorder %s19, 1
      %p105 = por %p103, %p104
      %p106 = scmp.ne.s32.totalorder %s95, %s96
      %p107 = scmp.eq.s32.totalorder %s19, 0
      %p108 = por %p106, %p107
      %p109 = scmp.ne.s32.totalorder %s95, %s96
      %p110 = scmp.eq.s32.totalorder %s20, 1
      %p111 = por %p109, %p110
      %p113 = scmp.ne.s32.totalorder %s96, %s112
      %p114 = scmp.eq.s32.totalorder %s20, 0
      %p115 = por %p113, %p114
      %s116 = ssub.s32 %s14, %s21
      %p117 = scmp.eq.s32.totalorder %s116, 0
      %s119 = sadd.s32 %s118, 1
      %s120 = scalar_select %p117, %s118, %s119
      %p123 = pneg %p117
      %p124 = scmp.eq.s32.totalorder %s14, 1
      %p125 = por %p123, %p124
      %p126 = scmp.ne.s32.totalorder %s118, %s121
      %p127 = scmp.eq.s32.totalorder %s14, 0
      %p128 = por %p126, %p127
      %p129 = scmp.ne.s32.totalorder %s118, %s121
      %p130 = scmp.eq.s32.totalorder %s19, 1
      %p131 = por %p129, %p130
      %p132 = scmp.ne.s32.totalorder %s121, %s122
      %p133 = scmp.eq.s32.totalorder %s19, 0
      %p134 = por %p132, %p133
      %p135 = scmp.ne.s32.totalorder %s121, %s122
      %p136 = scmp.eq.s32.totalorder %s20, 1
      %p137 = por %p135, %p136
      %p139 = scmp.ne.s32.totalorder %s122, %s138
      %p140 = scmp.eq.s32.totalorder %s20, 0
      %p141 = por %p139, %p140
      %p142 = scmp.le.s32.totalorder 1, %s14
      %p143 = scmp.lt.s32.totalorder %s14, 3
      %p144 = pnand %p142, %p143
      %p145 = pneg %p144
      // Predicated region
      $region9: #{tpu_custom_call.1} parent=5 // pred_check
        _
      $region10: #{tpu_custom_call.1} parent=5 // pred_check_branch
        %147 = sbr.rel (%p144) target = $region12
      $region11: #{tpu_custom_call.1} parent=5 // pred_region
        %s148 = ssub.s32 %s14, 1
        // Predicated region
        $region13: #{tpu_custom_call.1} parent=11 // pred_check
          %p149 = pneg %p61
        $region14: #{tpu_custom_call.1} parent=11 // pred_check_branch
          %151 = sbr.rel (%p149) target = $region16
        $region15: #{tpu_custom_call.1} parent=11 // pred_region
          _
        $region16: #{tpu_custom_call.1} parent=11 // pred_fallthru
          _
        // Predicated region
        $region17: #{tpu_custom_call.1} parent=11 // pred_check
          %p152 = pneg %p82
        $region18: #{tpu_custom_call.1} parent=11 // pred_check_branch
          %154 = sbr.rel (%p152) target = $region20
        $region19: #{tpu_custom_call.1} parent=11 // pred_region
          _
        $region20: #{tpu_custom_call.1} parent=11 // pred_fallthru
          _
      $region12: #{tpu_custom_call.1} parent=5 // pred_fallthru
        _
      %p155 = scmp.lt.s32.totalorder %s14, 2
      // Predicated region
      $region21: #{tpu_custom_call.1} parent=5 // pred_check
        %p156 = pneg %p155
      $region22: #{tpu_custom_call.1} parent=5 // pred_check_branch
        %158 = sbr.rel (%p156) target = $region24
      $region23: #{tpu_custom_call.1} parent=5 // pred_region
        // Predicated region
        $region25: #{tpu_custom_call.1} parent=23 // pred_check
          %p159 = pneg %p34
        $region26: #{tpu_custom_call.1} parent=23 // pred_check_branch
          %161 = sbr.rel (%p159) target = $region28
        $region27: #{tpu_custom_call.1} parent=23 // pred_region
          %s162 = smul.u32 16, %s14
          %p163 = scmp.lt.s32.totalorder %s162, 31
          %s164 = scalar_select %p163, %s162, 31
          %s165 = smul.addr %s164, 8
          %s166 = scalar_lea.vmem %s0, %s165
          %s167 = smul.u32 16, %s14
        $region28: #{tpu_custom_call.1} parent=23 // pred_fallthru
          _
      $region24: #{tpu_custom_call.1} parent=5 // pred_fallthru
        _
      %p168 = scmp.le.s32.totalorder 1, %s14
      %p169 = scmp.lt.s32.totalorder %s14, 3
      %p170 = pnand %p168, %p169
      %p171 = pneg %p170
      // Predicated region
      $region29: #{tpu_custom_call.1} parent=5 // pred_check
        _
      $region30: #{tpu_custom_call.1} parent=5 // pred_check_branch
        %173 = sbr.rel (%p170) target = $region32
      $region31: #{tpu_custom_call.1} parent=5 // pred_region
        %s174 = ssub.s32 %s14, 1
        %s175 = smul.u32 16, %s19
        %p176 = scmp.lt.s32.totalorder %s175, 31
        %s177 = scalar_select %p176, %s175, 31
        %s178 = smul.addr %s177, 8
        %s179 = scalar_lea.vmem %s0, %s178
        %p180 = pneg %p40
        %p181 = pneg %p37
        %p182 = pneg %p61
        %p183 = pneg %p58
        %p184 = pneg %p82
        %p185 = pneg %p79
        %p186 = pneg %p108
        %p187 = pneg %p105
        %s188 = sand.u32 %s95, 1
        %s189 = scalar_lea.sflag [#allocation3], %s188
        %s190 = sand.u32 %s95, 1
        %s191 = smul.addr %s190, 128
        %s192 = scalar_lea.vmem [#allocation2], %s191
        %p193 = pneg %p134
        %p194 = pneg %p131
        %s195 = smul.u32 16, %s19
        %p196 = scmp.lt.s32.totalorder %s195, 31
        %s197 = scalar_select %p196, %s195, 31
        %s198 = smul.addr %s197, 8
        %s199 = scalar_lea.vmem %s4, %s198
        %s200 = smul.u32 16, %s19
        %p201 = scmp.lt.s32.totalorder %s200, 31
        %s202 = scalar_select %p201, %s200, 31
        %s203 = smul.addr %s202, 8
        %s204 = scalar_lea.vmem %s0, %s203
        %s205 = smul.u32 16, %s19
        %s206 = smul.u32 16, %s19
        %s207 = smul.u32 16, %s19
        %p208 = scmp.lt.s32.totalorder %s207, 31
        %s209 = scalar_select %p208, %s207, 31
        %s210 = smul.addr %s209, 8
        %s211 = scalar_lea.vmem %s4, %s210
        %s212 = smul.u32 16, %s19
        %v213 = vld [vmem:[%s204] sm:$0xff]
        %v214 = vld [vmem:[%s204 + $0x8] sm:$0xff]
        %v215 = vld [vmem:[%s204 + $0x10] sm:$0xff]
        %v216 = vld [vmem:[%s204 + $0x18] sm:$0xff]
        %v217 = vld [vmem:[%s204 + $0x20] sm:$0xff]
        %v218 = vld [vmem:[%s204 + $0x28] sm:$0xff]
        %v219 = vld [vmem:[%s204 + $0x30] sm:$0xff]
        %v220 = vld [vmem:[%s204 + $0x38] sm:$0xff]
        %v221 = vld [vmem:[%s204 + $0x40] sm:$0xff]
        %v222 = vld [vmem:[%s204 + $0x48] sm:$0xff]
        %v223 = vld [vmem:[%s204 + $0x50] sm:$0xff]
        %v224 = vld [vmem:[%s204 + $0x58] sm:$0xff]
        %v225 = vld [vmem:[%s204 + $0x60] sm:$0xff]
        %v226 = vld [vmem:[%s204 + $0x68] sm:$0xff]
        %v227 = vld [vmem:[%s204 + $0x70] sm:$0xff]
        %v228 = vld [vmem:[%s204 + $0x78] sm:$0xff]
        %v229 = vld [vmem:[%s1] sm:$0xff]
        %v230 = vld [vmem:[%s1 + $0x8] sm:$0xff]
        %v231 = vld [vmem:[%s1 + $0x10] sm:$0xff]
        %v232 = vld [vmem:[%s1 + $0x18] sm:$0xff]
        %v233 = vld [vmem:[%s1 + $0x20] sm:$0xff]
        %v234 = vld [vmem:[%s1 + $0x28] sm:$0xff]
        %v235 = vld [vmem:[%s1 + $0x30] sm:$0xff]
        %v236 = vld [vmem:[%s1 + $0x38] sm:$0xff]
        %vm237 = vcmask 523264
        %v239 = vsel %vm237, %v213, 0
        %v242 = vsel %vm237, %v214, 0
        %v245 = vsel %vm237, %v215, 0
        %v248 = vsel %vm237, %v216, 0
        %v251 = vsel %vm237, %v217, 0
        %v254 = vsel %vm237, %v218, 0
        %v257 = vsel %vm237, %v219, 0
        %v260 = vsel %vm237, %v220, 0
        %v263 = vsel %vm237, %v221, 0
        %v266 = vsel %vm237, %v222, 0
        %v269 = vsel %vm237, %v223, 0
        %v272 = vsel %vm237, %v224, 0
        %v275 = vsel %vm237, %v225, 0
        %v278 = vsel %vm237, %v226, 0
        %v281 = vsel %vm237, %v227, 0
        %v284 = vsel %vm237, %v228, 0
        %286 = vmatprep.subr.mxu0 0.0
        %287 = vmatpush1.msra.mxu0 %v229
        %288 = vmatprep.subr.mxu0 0.0
        %289 = vmatpush1.msra.mxu0 %v230
        %290 = vmatprep.subr.mxu0 0.0
        %291 = vmatpush1.msra.mxu0 %v231
        %292 = vmatprep.subr.mxu0 0.0
        %293 = vmatpush1.msra.mxu0 %v232
        %294 = vmatprep.subr.mxu0 0.0
        %295 = vmatpush1.msra.mxu0 %v233
        %296 = vmatprep.subr.mxu0 0.0
        %297 = vmatpush1.msra.mxu0 %v234
        %298 = vmatprep.subr.mxu0 0.0
        %299 = vmatpush1.msra.mxu0 %v235
        %300 = vmatprep.subr.mxu0 0.0
        %301 = vmatpush1.msra.mxu0 %v236
        %302 = vmatprep.subr.mxu0 0.0
        %303 = vmatpush1.msra.mxu0 0.0
        %304 = vmatprep.subr.mxu0 0.0
        %305 = vmatpush1.msra.mxu0 0.0
        %306 = vmatprep.subr.mxu0 0.0
        %307 = vmatpush1.msra.mxu0 0.0
        %308 = vmatprep.subr.mxu0 0.0
        %309 = vmatpush1.msra.mxu0 0.0
        %310 = vmatprep.subr.mxu0 0.0
        %311 = vmatpush1.msra.mxu0 0.0
        %312 = vmatprep.subr.mxu0 0.0
        %313 = vmatpush1.msra.mxu0 0.0
        %314 = vmatprep.subr.mxu0 0.0
        %315 = vmatpush1.msra.mxu0 0.0
        %316 = vmatprep.subr.mxu0 0.0
        %317 = vmatpush1.msra.mxu0 0.0
        %318 = vmatprep.subr.mxu0 0.0
        %319 = vmatpush1.msra.mxu0 0.0
        %320 = vmatprep.subr.mxu0 0.0
        %321 = vmatpush1.msra.mxu0 0.0
        %322 = vmatprep.subr.mxu0 0.0
        %323 = vmatpush1.msra.mxu0 0.0
        %324 = vmatprep.subr.mxu0 0.0
        %325 = vmatpush1.msra.mxu0 0.0
        %326 = vmatprep.subr.mxu0 0.0
        %327 = vmatpush1.msra.mxu0 0.0
        %328 = vmatprep.subr.mxu0 0.0
        %329 = vmatpush1.msra.mxu0 0.0
        %330 = vmatprep.subr.mxu0 0.0
        %331 = vmatpush1.msra.mxu0 0.0
        %332 = vmatprep.subr.mxu0 0.0
        %333 = vmatpush1.msra.mxu0 0.0
        %334 = vmatprep.subr.mxu0 0.0
        %335 = vmatpush1.msra.mxu0 0.0
        %336 = vmatprep.subr.mxu0 0.0
        %337 = vmatpush1.msra.mxu0 0.0
        %338 = vmatprep.subr.mxu0 0.0
        %339 = vmatpush1.msra.mxu0 0.0
        %340 = vmatprep.subr.mxu0 0.0
        %341 = vmatpush1.msra.mxu0 0.0
        %342 = vmatprep.subr.mxu0 0.0
        %343 = vmatpush1.msra.mxu0 0.0
        %344 = vmatprep.subr.mxu0 0.0
        %345 = vmatpush1.msra.mxu0 0.0
        %346 = vmatprep.subr.mxu0 0.0
        %347 = vmatpush1.msra.mxu0 0.0
        %348 = vmatprep.subr.mxu0 0.0
        %349 = vmatpush1.msra.mxu0 0.0
        %350 = vmatprep.mubr.f32.mxu0 0.0
        %351 = vmatmul.mubr.f32.gmra.mrb[0].mxu0 %v239
        %v352 = vpop.f32.mrb[0].mxu0
        %v353 = vadd.f32 0.0, %v352
        %v354 = vpop.f32.mrb[0].mxu0
        %355 = vmatprep.mubr.f32.mxu0 0.0
        %356 = vmatmul.mubr.f32.gmra.mrb[0].mxu0 %v242
        %v357 = vpop.f32.mrb[0].mxu0
        %v358 = vadd.f32 0.0, %v357
        %v359 = vpop.f32.mrb[0].mxu0
        %360 = vmatprep.mubr.f32.mxu0 0.0
        %361 = vmatmul.mubr.f32.gmra.mrb[0].mxu0 %v245
        %v362 = vpop.f32.mrb[0].mxu0
        %v363 = vadd.f32 0.0, %v362
        %v364 = vpop.f32.mrb[0].mxu0
        %365 = vmatprep.mubr.f32.mxu0 0.0
        %366 = vmatmul.mubr.f32.gmra.mrb[0].mxu0 %v248
        %v367 = vpop.f32.mrb[0].mxu0
        %v368 = vadd.f32 0.0, %v367
        %v369 = vpop.f32.mrb[0].mxu0
        %370 = vmatprep.mubr.f32.mxu0 0.0
        %371 = vmatmul.mubr.f32.gmra.mrb[0].mxu0 %v251
        %v372 = vpop.f32.mrb[0].mxu0
        %v373 = vadd.f32 0.0, %v372
        %v374 = vpop.f32.mrb[0].mxu0
        %375 = vmatprep.mubr.f32.mxu0 0.0
        %376 = vmatmul.mubr.f32.gmra.mrb[0].mxu0 %v254
        %v377 = vpop.f32.mrb[0].mxu0
        %v378 = vadd.f32 0.0, %v377
        %v379 = vpop.f32.mrb[0].mxu0
        %380 = vmatprep.mubr.f32.mxu0 0.0
        %381 = vmatmul.mubr.f32.gmra.mrb[0].mxu0 %v257
        %v382 = vpop.f32.mrb[0].mxu0
        %v383 = vadd.f32 0.0, %v382
        %v384 = vpop.f32.mrb[0].mxu0
        %385 = vmatprep.mubr.f32.mxu0 0.0
        %386 = vmatmul.mubr.f32.gmra.mrb[0].mxu0 %v260
        %v387 = vpop.f32.mrb[0].mxu0
        %v388 = vadd.f32 0.0, %v387
        %v389 = vpop.f32.mrb[0].mxu0
        %390 = vmatprep.mubr.f32.mxu0 0.0
        %391 = vmatmul.mubr.f32.gmra.mrb[0].mxu0 %v263
        %v392 = vpop.f32.mrb[0].mxu0
        %v393 = vadd.f32 0.0, %v392
        %v394 = vpop.f32.mrb[0].mxu0
        %395 = vmatprep.mubr.f32.mxu0 0.0
        %396 = vmatmul.mubr.f32.gmra.mrb[0].mxu0 %v266
        %v397 = vpop.f32.mrb[0].mxu0
        %v398 = vadd.f32 0.0, %v397
        %v399 = vpop.f32.mrb[0].mxu0
        %400 = vmatprep.mubr.f32.mxu0 0.0
        %401 = vmatmul.mubr.f32.gmra.mrb[0].mxu0 %v269
        %v402 = vpop.f32.mrb[0].mxu0
        %v403 = vadd.f32 0.0, %v402
        %v404 = vpop.f32.mrb[0].mxu0
        %405 = vmatprep.mubr.f32.mxu0 0.0
        %406 = vmatmul.mubr.f32.gmra.mrb[0].mxu0 %v272
        %v407 = vpop.f32.mrb[0].mxu0
        %v408 = vadd.f32 0.0, %v407
        %v409 = vpop.f32.mrb[0].mxu0
        %410 = vmatprep.mubr.f32.mxu0 0.0
        %411 = vmatmul.mubr.f32.gmra.mrb[0].mxu0 %v275
        %v412 = vpop.f32.mrb[0].mxu0
        %v413 = vadd.f32 0.0, %v412
        %v414 = vpop.f32.mrb[0].mxu0
        %415 = vmatprep.mubr.f32.mxu0 0.0
        %416 = vmatmul.mubr.f32.gmra.mrb[0].mxu0 %v278
        %v417 = vpop.f32.mrb[0].mxu0
        %v418 = vadd.f32 0.0, %v417
        %v419 = vpop.f32.mrb[0].mxu0
        %420 = vmatprep.mubr.f32.mxu0 0.0
        %421 = vmatmul.mubr.f32.gmra.mrb[0].mxu0 %v281
        %v422 = vpop.f32.mrb[0].mxu0
        %v423 = vadd.f32 0.0, %v422
        %v424 = vpop.f32.mrb[0].mxu0
        %425 = vmatprep.mubr.f32.mxu0 0.0
        %426 = vmatmul.mubr.f32.gmra.mrb[0].mxu0 %v284
        %v427 = vpop.f32.mrb[0].mxu0
        %v428 = vadd.f32 0.0, %v427
        %v429 = vpop.f32.mrb[0].mxu0
        %430 = vdwg.mxu0
        %431 = vst [vmem:[%s192] sm:$0xff] %v353
        %432 = vst [vmem:[%s192 + $0x8] sm:$0xff] %v358
        %433 = vst [vmem:[%s192 + $0x10] sm:$0xff] %v363
        %434 = vst [vmem:[%s192 + $0x18] sm:$0xff] %v368
        %435 = vst [vmem:[%s192 + $0x20] sm:$0xff] %v373
        %436 = vst [vmem:[%s192 + $0x28] sm:$0xff] %v378
        %437 = vst [vmem:[%s192 + $0x30] sm:$0xff] %v383
        %438 = vst [vmem:[%s192 + $0x38] sm:$0xff] %v388
        %439 = vst [vmem:[%s192 + $0x40] sm:$0xff] %v393
        %440 = vst [vmem:[%s192 + $0x48] sm:$0xff] %v398
        %441 = vst [vmem:[%s192 + $0x50] sm:$0xff] %v403
        %442 = vst [vmem:[%s192 + $0x58] sm:$0xff] %v408
        %443 = vst [vmem:[%s192 + $0x60] sm:$0xff] %v413
        %444 = vst [vmem:[%s192 + $0x68] sm:$0xff] %v418
        %445 = vst [vmem:[%s192 + $0x70] sm:$0xff] %v423
        %446 = vst [vmem:[%s192 + $0x78] sm:$0xff] %v428
        %v447 = vld [vmem:[%s2] sm:$0xff]
        %v448 = vld [vmem:[%s2 + $0x8] sm:$0xff]
        %v449 = vld [vmem:[%s2 + $0x10] sm:$0xff]
        %v450 = vld [vmem:[%s2 + $0x18] sm:$0xff]
        %v451 = vld [vmem:[%s2 + $0x20] sm:$0xff]
        %v452 = vld [vmem:[%s2 + $0x28] sm:$0xff]
        %v453 = vld [vmem:[%s2 + $0x30] sm:$0xff]
        %v454 = vld [vmem:[%s2 + $0x38] sm:$0xff]
        %v455 = vld [vmem:[%s2 + $0x40] sm:$0xff]
        %v456 = vld [vmem:[%s2 + $0x48] sm:$0xff]
        %v457 = vld [vmem:[%s2 + $0x50] sm:$0xff]
        %v458 = vld [vmem:[%s2 + $0x58] sm:$0xff]
        %v459 = vld [vmem:[%s2 + $0x60] sm:$0xff]
        %v460 = vld [vmem:[%s2 + $0x68] sm:$0xff]
        %v461 = vld [vmem:[%s2 + $0x70] sm:$0xff]
        %v462 = vld [vmem:[%s2 + $0x78] sm:$0xff]
        %463 = vmatprep.subr.mxu0 0.0
        %464 = vmatpush1.msra.mxu0 %v447
        %465 = vmatprep.subr.mxu0 0.0
        %466 = vmatpush1.msra.mxu0 %v448
        %467 = vmatprep.subr.mxu0 0.0
        %468 = vmatpush1.msra.mxu0 %v449
        %469 = vmatprep.subr.mxu0 0.0
        %470 = vmatpush1.msra.mxu0 %v450
        %471 = vmatprep.subr.mxu0 0.0
        %472 = vmatpush1.msra.mxu0 %v451
        %473 = vmatprep.subr.mxu0 0.0
        %474 = vmatpush1.msra.mxu0 %v452
        %475 = vmatprep.subr.mxu0 0.0
        %476 = vmatpush1.msra.mxu0 %v453
        %477 = vmatprep.subr.mxu0 0.0
        %478 = vmatpush1.msra.mxu0 %v454
        %479 = vmatprep.subr.mxu0 0.0
        %480 = vmatpush1.msra.mxu0 %v455
        %481 = vmatprep.subr.mxu0 0.0
        %482 = vmatpush1.msra.mxu0 %v456
        %483 = vmatprep.subr.mxu0 0.0
        %484 = vmatpush1.msra.mxu0 %v457
        %485 = vmatprep.subr.mxu0 0.0
        %486 = vmatpush1.msra.mxu0 %v458
        %487 = vmatprep.subr.mxu0 0.0
        %488 = vmatpush1.msra.mxu0 %v459
        %489 = vmatprep.subr.mxu0 0.0
        %490 = vmatpush1.msra.mxu0 %v460
        %491 = vmatprep.subr.mxu0 0.0
        %492 = vmatpush1.msra.mxu0 %v461
        %493 = vmatprep.subr.mxu0 0.0
        %494 = vmatpush1.msra.mxu0 %v462
        %495 = vmatprep.subr.mxu0 0.0
        %496 = vmatpush1.msra.mxu0 0.0
        %497 = vmatprep.subr.mxu0 0.0
        %498 = vmatpush1.msra.mxu0 0.0
        %499 = vmatprep.subr.mxu0 0.0
        %500 = vmatpush1.msra.mxu0 0.0
        %501 = vmatprep.subr.mxu0 0.0
        %502 = vmatpush1.msra.mxu0 0.0
        %503 = vmatprep.subr.mxu0 0.0
        %504 = vmatpush1.msra.mxu0 0.0
        %505 = vmatprep.subr.mxu0 0.0
        %506 = vmatpush1.msra.mxu0 0.0
        %507 = vmatprep.subr.mxu0 0.0
        %508 = vmatpush1.msra.mxu0 0.0
        %509 = vmatprep.subr.mxu0 0.0
        %510 = vmatpush1.msra.mxu0 0.0
        %511 = vmatprep.subr.mxu0 0.0
        %512 = vmatpush1.msra.mxu0 0.0
        %513 = vmatprep.subr.mxu0 0.0
        %514 = vmatpush1.msra.mxu0 0.0
        %515 = vmatprep.subr.mxu0 0.0
        %516 = vmatpush1.msra.mxu0 0.0
        %517 = vmatprep.subr.mxu0 0.0
        %518 = vmatpush1.msra.mxu0 0.0
        %519 = vmatprep.subr.mxu0 0.0
        %520 = vmatpush1.msra.mxu0 0.0
        %521 = vmatprep.subr.mxu0 0.0
        %522 = vmatpush1.msra.mxu0 0.0
        %523 = vmatprep.subr.mxu0 0.0
        %524 = vmatpush1.msra.mxu0 0.0
        %525 = vmatprep.subr.mxu0 0.0
        %526 = vmatpush1.msra.mxu0 0.0
        %527 = vmatprep.mubr.f32.mxu0 0.0
        %528 = vmatmul.mubr.f32.gmra.mrb[0].mxu0 %v353
        %v529 = vpop.f32.mrb[0].mxu0
        %v530 = vadd.f32 0.0, %v529
        %v531 = vpop.f32.mrb[0].mxu0
        %532 = vmatprep.mubr.f32.mxu0 0.0
        %533 = vmatmul.mubr.f32.gmra.mrb[0].mxu0 %v358
        %v534 = vpop.f32.mrb[0].mxu0
        %v535 = vadd.f32 0.0, %v534
        %v536 = vpop.f32.mrb[0].mxu0
        %537 = vmatprep.mubr.f32.mxu0 0.0
        %538 = vmatmul.mubr.f32.gmra.mrb[0].mxu0 %v363
        %v539 = vpop.f32.mrb[0].mxu0
        %v540 = vadd.f32 0.0, %v539
        %v541 = vpop.f32.mrb[0].mxu0
        %542 = vmatprep.mubr.f32.mxu0 0.0
        %543 = vmatmul.mubr.f32.gmra.mrb[0].mxu0 %v368
        %v544 = vpop.f32.mrb[0].mxu0
        %v545 = vadd.f32 0.0, %v544
        %v546 = vpop.f32.mrb[0].mxu0
        %547 = vmatprep.mubr.f32.mxu0 0.0
        %548 = vmatmul.mubr.f32.gmra.mrb[0].mxu0 %v373
        %v549 = vpop.f32.mrb[0].mxu0
        %v550 = vadd.f32 0.0, %v549
        %v551 = vpop.f32.mrb[0].mxu0
        %552 = vmatprep.mubr.f32.mxu0 0.0
        %553 = vmatmul.mubr.f32.gmra.mrb[0].mxu0 %v378
        %v554 = vpop.f32.mrb[0].mxu0
        %v555 = vadd.f32 0.0, %v554
        %v556 = vpop.f32.mrb[0].mxu0
        %557 = vmatprep.mubr.f32.mxu0 0.0
        %558 = vmatmul.mubr.f32.gmra.mrb[0].mxu0 %v383
        %v559 = vpop.f32.mrb[0].mxu0
        %v560 = vadd.f32 0.0, %v559
        %v561 = vpop.f32.mrb[0].mxu0
        %562 = vmatprep.mubr.f32.mxu0 0.0
        %563 = vmatmul.mubr.f32.gmra.mrb[0].mxu0 %v388
        %v564 = vpop.f32.mrb[0].mxu0
        %v565 = vadd.f32 0.0, %v564
        %v566 = vpop.f32.mrb[0].mxu0
        %567 = vmatprep.mubr.f32.mxu0 0.0
        %568 = vmatmul.mubr.f32.gmra.mrb[0].mxu0 %v393
        %v569 = vpop.f32.mrb[0].mxu0
        %v570 = vadd.f32 0.0, %v569
        %v571 = vpop.f32.mrb[0].mxu0
        %572 = vmatprep.mubr.f32.mxu0 0.0
        %573 = vmatmul.mubr.f32.gmra.mrb[0].mxu0 %v398
        %v574 = vpop.f32.mrb[0].mxu0
        %v575 = vadd.f32 0.0, %v574
        %v576 = vpop.f32.mrb[0].mxu0
        %577 = vmatprep.mubr.f32.mxu0 0.0
        %578 = vmatmul.mubr.f32.gmra.mrb[0].mxu0 %v403
        %v579 = vpop.f32.mrb[0].mxu0
        %v580 = vadd.f32 0.0, %v579
        %v581 = vpop.f32.mrb[0].mxu0
        %582 = vmatprep.mubr.f32.mxu0 0.0
        %583 = vmatmul.mubr.f32.gmra.mrb[0].mxu0 %v408
        %v584 = vpop.f32.mrb[0].mxu0
        %v585 = vadd.f32 0.0, %v584
        %v586 = vpop.f32.mrb[0].mxu0
        %587 = vmatprep.mubr.f32.mxu0 0.0
        %588 = vmatmul.mubr.f32.gmra.mrb[0].mxu0 %v413
        %v589 = vpop.f32.mrb[0].mxu0
        %v590 = vadd.f32 0.0, %v589
        %v591 = vpop.f32.mrb[0].mxu0
        %592 = vmatprep.mubr.f32.mxu0 0.0
        %593 = vmatmul.mubr.f32.gmra.mrb[0].mxu0 %v418
        %v594 = vpop.f32.mrb[0].mxu0
        %v595 = vadd.f32 0.0, %v594
        %v596 = vpop.f32.mrb[0].mxu0
        %597 = vmatprep.mubr.f32.mxu0 0.0
        %598 = vmatmul.mubr.f32.gmra.mrb[0].mxu0 %v423
        %v599 = vpop.f32.mrb[0].mxu0
        %v600 = vadd.f32 0.0, %v599
        %v601 = vpop.f32.mrb[0].mxu0
        %602 = vmatprep.mubr.f32.mxu0 0.0
        %603 = vmatmul.mubr.f32.gmra.mrb[0].mxu0 %v428
        %v604 = vpop.f32.mrb[0].mxu0
        %v605 = vadd.f32 0.0, %v604
        %v606 = vpop.f32.mrb[0].mxu0
        %607 = vdwg.mxu0
        %vm608 = vcmask 15360
        %609 = vst.msk [vmem:[%s211] sm:$0xff] %vm608, %v530
        %610 = vst.msk [vmem:[%s211 + $0x8] sm:$0xff] %vm608, %v535
        %611 = vst.msk [vmem:[%s211 + $0x10] sm:$0xff] %vm608, %v540
        %612 = vst.msk [vmem:[%s211 + $0x18] sm:$0xff] %vm608, %v545
        %613 = vst.msk [vmem:[%s211 + $0x20] sm:$0xff] %vm608, %v550
        %614 = vst.msk [vmem:[%s211 + $0x28] sm:$0xff] %vm608, %v555
        %615 = vst.msk [vmem:[%s211 + $0x30] sm:$0xff] %vm608, %v560
        %616 = vst.msk [vmem:[%s211 + $0x38] sm:$0xff] %vm608, %v565
        %617 = vst.msk [vmem:[%s211 + $0x40] sm:$0xff] %vm608, %v570
        %618 = vst.msk [vmem:[%s211 + $0x48] sm:$0xff] %vm608, %v575
        %619 = vst.msk [vmem:[%s211 + $0x50] sm:$0xff] %vm608, %v580
        %620 = vst.msk [vmem:[%s211 + $0x58] sm:$0xff] %vm608, %v585
        %621 = vst.msk [vmem:[%s211 + $0x60] sm:$0xff] %vm608, %v590
        %622 = vst.msk [vmem:[%s211 + $0x68] sm:$0xff] %vm608, %v595
        %623 = vst.msk [vmem:[%s211 + $0x70] sm:$0xff] %vm608, %v600
        %624 = vst.msk [vmem:[%s211 + $0x78] sm:$0xff] %vm608, %v605
        %s625 = sand.u32 %s95, 1
        %s626 = scalar_lea.sflag [#allocation3], %s625
        %s627 = sand.u32 %s95, 1
        %s628 = smul.addr %s627, 128
        %s629 = scalar_lea.vmem [#allocation2], %s628
        %s630 = smul.u32 16, %s19
        %p631 = scmp.lt.s32.totalorder %s630, 31
        %s632 = scalar_select %p631, %s630, 31
        %s633 = smul.addr %s632, 8
        %s634 = scalar_lea.vmem %s4, %s633
        // Predicated region
        $region33: #{tpu_custom_call.1} parent=31 // pred_check
          %p635 = pneg %p105
        $region34: #{tpu_custom_call.1} parent=31 // pred_check_branch
          %637 = sbr.rel (%p635) target = $region36
        $region35: #{tpu_custom_call.1} parent=31 // pred_region
          %s638 = smul.u32 16, %s19
          %s640 = ssub.s32 2048, 2048
          %641 = vsyncadd %s626, %s640
          %s642 = smul.addr %s638, 128
          %s643 = scalar_lea.hbm %s3, %s642
          %s644 = sshll.u32 %s629, 4
          %s645 = int_to_ptr.vmem [resolvable:$true] %s644
          %650 = dma.vmem_to_hbm [thread:$0]  %s645, 2048, %s643, %s626, 128, 128, 8
        $region36: #{tpu_custom_call.1} parent=31 // pred_fallthru
          _
        // Predicated region
        $region37: #{tpu_custom_call.1} parent=31 // pred_check
          %p651 = pneg %p131
        $region38: #{tpu_custom_call.1} parent=31 // pred_check_branch
          %653 = sbr.rel (%p651) target = $region40
        $region39: #{tpu_custom_call.1} parent=31 // pred_region
          %s654 = smul.u32 16, %s19
        $region40: #{tpu_custom_call.1} parent=31 // pred_fallthru
          _
      $region32: #{tpu_custom_call.1} parent=5 // pred_fallthru
        _
      %p655 = scmp.le.s32.totalorder 2, %s14
      // Predicated region
      $region41: #{tpu_custom_call.1} parent=5 // pred_check
        %p656 = pneg %p655
      $region42: #{tpu_custom_call.1} parent=5 // pred_check_branch
        %658 = sbr.rel (%p656) target = $region44
      $region43: #{tpu_custom_call.1} parent=5 // pred_region
        %s659 = ssub.s32 %s14, 2
        // Predicated region
        $region45: #{tpu_custom_call.1} parent=43 // pred_check
          %p660 = pneg %p111
        $region46: #{tpu_custom_call.1} parent=43 // pred_check_branch
          %662 = sbr.rel (%p660) target = $region48
        $region47: #{tpu_custom_call.1} parent=43 // pred_region
          %s663 = sand.u32 %s96, 1
          %s664 = scalar_lea.sflag [#allocation3], %s663
          %s665 = sand.u32 %s96, 1
          %s666 = smul.addr %s665, 128
          %s667 = scalar_lea.vmem [#allocation2], %s666
          %668 = dma.done %s664, 2048
        $region48: #{tpu_custom_call.1} parent=43 // pred_fallthru
          _
        // Predicated region
        $region49: #{tpu_custom_call.1} parent=43 // pred_check
          %p669 = pneg %p137
        $region50: #{tpu_custom_call.1} parent=43 // pred_check_branch
          %671 = sbr.rel (%p669) target = $region52
        $region51: #{tpu_custom_call.1} parent=43 // pred_region
          %s672 = smul.u32 16, %s20
          %p673 = scmp.lt.s32.totalorder %s672, 31
          %s674 = scalar_select %p673, %s672, 31
          %s675 = smul.addr %s674, 8
          %s676 = scalar_lea.vmem %s4, %s675
        $region52: #{tpu_custom_call.1} parent=43 // pred_fallthru
          _
      $region44: #{tpu_custom_call.1} parent=5 // pred_fallthru
        _
    $region6: #{tpu_custom_call.1} parent=1 // loop_footer
      %s18 = sadd.s32 1, %s14
    $region7: #{tpu_custom_call.1} parent=1 // loop_footer_branch
      %13 = sbr.rel target = $region3
    $region8: #{tpu_custom_call.1} parent=1 // loop_exit
      _
    %677 = vsyncpa [#allocation3], 1
    %s678 = scalar_lea.sflag [#allocation3], 1
    %679 = vsyncpa %s678, 1

</llo_original>
